<compile_context>
chip_gen: v7x
topology: tpu7x:2x2x1
jax: 0.10.0
libtpu: 0.0.40
codegen_flags: <defaults>
</compile_context>

<pallas_src>
import math

import jax
import jax.numpy as jnp
from jax.experimental import pallas as pl
from jax.experimental.pallas import tpu as pltpu


_TILE_B_CAP = 2048  # rows; keeps double-buffered tiles well under VMEM on all gens


def _round_up(v, m):
    return ((v + m - 1) // m) * m


def _tensorcores_per_chip():
    """2 TensorCores on v7x, 1 on v5e/v6e (best-effort; default 1)."""
    try:
        kind = jax.devices()[0].device_kind.lower()
    except Exception:
        return 1
    return 2 if "v7" in kind else 1


def _choose_tile_b(B, n_cores, cap=_TILE_B_CAP):
    """Pick (tile_b, padded_B). Prefer a multiple-of-8 tile that divides B
    exactly (no batch padding) while giving >= n_cores grid steps."""
    if B >= 8 and B % 8 == 0:
        best = None
        t = 8
        while t <= min(B, cap):
            if B % t == 0 and (B // t) >= n_cores:
                best = t
            t += 8
        if best is not None:
            return best, B
    # Ragged / tiny batch: minimal padding.
    tile = min(cap, _round_up(max(pl.cdiv(B, max(n_cores, 1)), 1), 8))
    return tile, _round_up(B, tile)


def mlp_kernel(x_ref, w1_ref, b1_ref, w2_ref, b2_ref, o_ref):
    # x arrives f32; downcast to bf16 on the VPU for the MXU.
    xb = x_ref[...].astype(w1_ref.dtype)
    # hidden = relu(x @ W1 + b1): bf16 MXU matmul, f32 accumulation,
    # bias-add + ReLU in f32 on the VPU.
    h = jnp.dot(xb, w1_ref[...], preferred_element_type=jnp.float32)
    h = jnp.maximum(h + b1_ref[...], 0.0)            # b1 is (1, n_hidden), broadcasts
    # out = hidden @ W2 + b2 (downcast only for the second MXU pass).
    o = jnp.dot(h.astype(w2_ref.dtype), w2_ref[...],
                preferred_element_type=jnp.float32)
    o_ref[...] = (o + b2_ref[...]).astype(o_ref.dtype)


def prepare_params(w1, b1, w2, b2, *, compute_dtype=jnp.bfloat16):
    """One-time (per weight update) prep: bf16 cast + 128-lane output pad.
    w1: (n_in, n_hidden); b1: (n_hidden,); w2: (n_hidden, n_out); b2: (n_out,)."""
    n_in, n_hidden = w1.shape
    n_out = w2.shape[1]
    n_out_p = _round_up(n_out, 128)

    w1_c = w1.astype(compute_dtype)
    w2_c = w2.astype(compute_dtype)
    b2_f = b2.astype(jnp.float32)
    if n_out_p > n_out:
        w2_c = jnp.pad(w2_c, ((0, 0), (0, n_out_p - n_out)))
        b2_f = jnp.pad(b2_f, ((0, n_out_p - n_out),))
    return {
        "w1": w1_c,
        "b1": b1.astype(jnp.float32).reshape(1, n_hidden),
        "w2": w2_c,
        "b2": b2_f.reshape(1, n_out_p),
        "n_out": n_out,
    }


def mlp_forward(x, params, *, tile_b=None, out_dtype=jnp.bfloat16):
    """x: (B, n_in) float32; params from prepare_params. Returns (B, n_out) f32."""
    B, n_in = x.shape
    w1, b1, w2, b2 = params["w1"], params["b1"], params["w2"], params["b2"]
    n_hidden = w1.shape[1]
    n_out_p = w2.shape[1]
    n_out = params["n_out"]

    n_cores = _tensorcores_per_chip()
    if tile_b is None:
        tile_b, B_p = _choose_tile_b(B, n_cores)
    else:
        B_p = _round_up(B, tile_b)

    x_in = x.astype(jnp.float32)
    if B_p > B:
        # Only for ragged batches; padded rows are sliced off right after the call.
        x_in = jnp.pad(x_in, ((0, B_p - B), (0, 0)))

    grid = (B_p // tile_b,)
    out_isize = jnp.dtype(out_dtype).itemsize
    w_isize = jnp.dtype(w1.dtype).itemsize

    # Double-buffered x (f32) + out (bf16) tiles, resident weights, + headroom.
    vmem_need = (2 * tile_b * n_in * 4
                 + 2 * tile_b * n_out_p * out_isize
                 + (n_in * n_hidden + n_hidden * n_out_p) * w_isize
                 + (n_hidden + n_out_p) * 4)
    vmem_limit = int(min(max(2 * vmem_need + (4 << 20), 32 << 20), 48 << 20))

    flops = 2 * B_p * (n_in * n_hidden + n_hidden * n_out_p)
    bytes_accessed = (
        B_p * n_in * 4
        + (n_in * n_hidden + n_hidden * n_out_p) * w_isize
        + (n_hidden + n_out_p) * 4
        + B_p * n_out_p * out_isize
    )

    out_p = pl.pallas_call(
        mlp_kernel,
        out_shape=jax.ShapeDtypeStruct((B_p, n_out_p), out_dtype),
        grid_spec=pltpu.PrefetchScalarGridSpec(
            num_scalar_prefetch=0,
            grid=grid,
            in_specs=[
                pl.BlockSpec((tile_b, n_in), lambda i: (i, 0)),       # x tile (f32)
                pl.BlockSpec((n_in, n_hidden), lambda i: (0, 0)),     # W1 (resident)
                pl.BlockSpec((1, n_hidden), lambda i: (0, 0)),        # b1
                pl.BlockSpec((n_hidden, n_out_p), lambda i: (0, 0)),  # W2 (resident, lane-padded)
                pl.BlockSpec((1, n_out_p), lambda i: (0, 0)),         # b2 (lane-padded)
            ],
            out_specs=pl.BlockSpec((tile_b, n_out_p), lambda i: (i, 0)),
        ),
        compiler_params=pltpu.CompilerParams(
            dimension_semantics=("parallel",),
            vmem_limit_bytes=vmem_limit,
        ),
        cost_estimate=pl.CostEstimate(
            flops=flops, transcendentals=0, bytes_accessed=bytes_accessed),
    )(x_in, w1, b1, w2, b2)

    # Slice off lane/batch padding immediately (padded rows hold garbage).
    return out_p[:B, :n_out].astype(jnp.float32)


def init_params(key, n_in, n_hidden, n_out, dtype=jnp.float32):
    """Deterministic init mirroring the module: kaiming_normal_(fan_in, relu)
    for weights, PyTorch Linear default uniform(+-1/sqrt(fan_in)) for biases."""
    k1, k2, k3, k4 = jax.random.split(key, 4)
    std1 = math.sqrt(2.0 / n_in)
    std2 = math.sqrt(2.0 / n_hidden)
    # stored as (in, out) = W.T relative to torch's (out, in)
    w1 = (jax.random.normal(k1, (n_in, n_hidden), dtype) * std1).astype(dtype)
    w2 = (jax.random.normal(k2, (n_hidden, n_out), dtype) * std2).astype(dtype)
    bound1 = 1.0 / math.sqrt(n_in)
    bound2 = 1.0 / math.sqrt(n_hidden)
    b1 = jax.random.uniform(k3, (n_hidden,), dtype, -bound1, bound1)
    b2 = jax.random.uniform(k4, (n_out,), dtype, -bound2, bound2)
    return w1, b1, w2, b2


def mlp_reference_bf16(x, w1, b1, w2, b2):
    """Plain-JAX reference mirroring the kernel's bf16-in / f32-acc / bf16-out math."""
    xb = x.astype(jnp.bfloat16)
    h = jnp.dot(xb, w1.astype(jnp.bfloat16), preferred_element_type=jnp.float32)
    h = jnp.maximum(h + b1.astype(jnp.float32), 0.0)
    o = jnp.dot(h.astype(jnp.bfloat16), w2.astype(jnp.bfloat16),
                preferred_element_type=jnp.float32) + b2.astype(jnp.float32)
    return o.astype(jnp.bfloat16).astype(jnp.float32)


if __name__ == "__main__":
    # config: n_in = 4*8*8 = 256, n_hidden = 128, n_out = 8
    B, C, H, W = 64, 4, 8, 8
    n_in = C * H * W
    n_hidden = 128
    n_out = 8

    key = jax.random.PRNGKey(0)
    kx, kp = jax.random.split(key)
    x_nchw = jax.random.normal(kx, (B, C, H, W), jnp.float32)

    w1, b1, w2, b2 = init_params(kp, n_in, n_hidden, n_out)
    params = prepare_params(w1, b1, w2, b2)   # one-time weight cast/pad (hoisted)

    # glue: nn.Flatten() equivalent (flatten all non-batch dims)
    x_flat = x_nchw.reshape(B, -1)

    out = mlp_forward(x_flat, params)
    out = jax.block_until_ready(out)
    assert out.shape == (B, n_out)

    # Tight check vs a reference that mirrors the kernel's bf16/f32 math.
    ref_bf16 = mlp_reference_bf16(x_flat, w1, b1, w2, b2)
    err_bf16 = float(jnp.max(jnp.abs(out - ref_bf16)))
    assert jnp.allclose(out, ref_bf16, atol=2e-2, rtol=2e-2), (
        f"mismatch vs bf16-mirrored reference, max abs err={err_bf16}")

    # Loose sanity check vs the pure-f32 reference.
    ref_f32 = jnp.maximum(x_flat @ w1 + b1, 0.0) @ w2 + b2
    err_f32 = float(jnp.max(jnp.abs(out - ref_f32)))
    assert jnp.allclose(out, ref_f32, atol=6e-2, rtol=6e-2), (
        f"mismatch vs f32 reference, max abs err={err_f32}")

    print("KERNEL_OK")
</pallas_src>

<mosaic_0001>
module attributes {stable_mosaic.version = 11 : i64} {
  func.func @mlp_kernel(%arg0: i32, %arg1: memref<64x256xf32, #tpu.memory_space<vmem>>, %arg2: memref<256x128xbf16, #tpu.memory_space<vmem>>, %arg3: memref<1x128xf32, #tpu.memory_space<vmem>>, %arg4: memref<128x128xbf16, #tpu.memory_space<vmem>>, %arg5: memref<1x128xf32, #tpu.memory_space<vmem>>, %arg6: memref<64x128xbf16, #tpu.memory_space<vmem>>) attributes {dimension_semantics = [#tpu.dimension_semantics<parallel>], iteration_bounds = array<i64: 1>, scalar_prefetch = 0 : i64, scratch_operands = 0 : i64, tpu.core_type = #tpu.core_type<tc>, window_params = [{transform_indices = @transform_0, window_bounds = array<i64: 64, 256>}, {pipeline_mode = #tpu.pipeline_mode<synchronous>, transform_indices = @transform_1, window_bounds = array<i64: 256, 128>}, {pipeline_mode = #tpu.pipeline_mode<synchronous>, transform_indices = @transform_2, window_bounds = array<i64: 1, 128>}, {pipeline_mode = #tpu.pipeline_mode<synchronous>, transform_indices = @transform_3, window_bounds = array<i64: 128, 128>}, {pipeline_mode = #tpu.pipeline_mode<synchronous>, transform_indices = @transform_4, window_bounds = array<i64: 1, 128>}, {transform_indices = @transform_5, window_bounds = array<i64: 64, 128>}]} {
    %c0 = arith.constant 0 : index
    %c0_0 = arith.constant 0 : index
    %0 = vector.load %arg1[%c0, %c0_0] : memref<64x256xf32, #tpu.memory_space<vmem>>, vector<64x256xf32>
    %1 = arith.truncf %0 : vector<64x256xf32> to vector<64x256xbf16>
    %c0_1 = arith.constant 0 : index
    %c0_2 = arith.constant 0 : index
    %2 = vector.load %arg2[%c0_1, %c0_2] : memref<256x128xbf16, #tpu.memory_space<vmem>>, vector<256x128xbf16>
    %cst = arith.constant dense<0.000000e+00> : vector<64x128xf32>
    %3 = tpu.matmul %1, %2, %cst {dimension_numbers = #tpu.dot_dimension_numbers<[1], [0], [0], [1], [0, 0, 1, 1], [], []>} : vector<64x256xbf16>, vector<256x128xbf16>, vector<64x128xf32> -> vector<64x128xf32>
    %c0_3 = arith.constant 0 : index
    %c0_4 = arith.constant 0 : index
    %4 = vector.load %arg3[%c0_3, %c0_4] : memref<1x128xf32, #tpu.memory_space<vmem>>, vector<1x128xf32>
    %5 = vector.broadcast %4 : vector<1x128xf32> to vector<64x128xf32>
    %6 = arith.addf %3, %5 : vector<64x128xf32>
    %cst_5 = arith.constant 0.000000e+00 : f32
    %7 = vector.broadcast %cst_5 : f32 to vector<64x128xf32>
    %8 = arith.maximumf %6, %7 : vector<64x128xf32>
    %9 = arith.truncf %8 : vector<64x128xf32> to vector<64x128xbf16>
    %c0_6 = arith.constant 0 : index
    %c0_7 = arith.constant 0 : index
    %10 = vector.load %arg4[%c0_6, %c0_7] : memref<128x128xbf16, #tpu.memory_space<vmem>>, vector<128x128xbf16>
    %cst_8 = arith.constant dense<0.000000e+00> : vector<64x128xf32>
    %11 = tpu.matmul %9, %10, %cst_8 {dimension_numbers = #tpu.dot_dimension_numbers<[1], [0], [0], [1], [0, 0, 1, 1], [], []>} : vector<64x128xbf16>, vector<128x128xbf16>, vector<64x128xf32> -> vector<64x128xf32>
    %c0_9 = arith.constant 0 : index
    %c0_10 = arith.constant 0 : index
    %12 = vector.load %arg5[%c0_9, %c0_10] : memref<1x128xf32, #tpu.memory_space<vmem>>, vector<1x128xf32>
    %13 = vector.broadcast %12 : vector<1x128xf32> to vector<64x128xf32>
    %14 = arith.addf %11, %13 : vector<64x128xf32>
    %15 = arith.truncf %14 : vector<64x128xf32> to vector<64x128xbf16>
    %c0_11 = arith.constant 0 : index
    %c0_12 = arith.constant 0 : index
    %16 = vector.load %arg6[%c0_11, %c0_12] : memref<64x128xbf16, #tpu.memory_space<vmem>>, vector<64x128xbf16>
    tpu.vector_store %arg6[%c0_11, %c0_12], %15 {strides = array<i32>} : memref<64x128xbf16, #tpu.memory_space<vmem>>, vector<64x128xbf16>,
    return
  }
  func.func @transform_0(%arg0: i32) -> (i32, i32) {
    %c0_i32 = arith.constant 0 : i32
    %c0_i32_0 = arith.constant 0 : i32
    return %arg0, %c0_i32 : i32, i32
  }
  func.func @transform_1(%arg0: i32) -> (i32, i32) {
    %c0_i32 = arith.constant 0 : i32
    %c0_i32_0 = arith.constant 0 : i32
    %c0_i32_1 = arith.constant 0 : i32
    return %c0_i32, %c0_i32_0 : i32, i32
  }
  func.func @transform_2(%arg0: i32) -> (i32, i32) {
    %c0_i32 = arith.constant 0 : i32
    %c0_i32_0 = arith.constant 0 : i32
    %c0_i32_1 = arith.constant 0 : i32
    return %c0_i32, %c0_i32_0 : i32, i32
  }
  func.func @transform_3(%arg0: i32) -> (i32, i32) {
    %c0_i32 = arith.constant 0 : i32
    %c0_i32_0 = arith.constant 0 : i32
    %c0_i32_1 = arith.constant 0 : i32
    return %c0_i32, %c0_i32_0 : i32, i32
  }
  func.func @transform_4(%arg0: i32) -> (i32, i32) {
    %c0_i32 = arith.constant 0 : i32
    %c0_i32_0 = arith.constant 0 : i32
    %c0_i32_1 = arith.constant 0 : i32
    return %c0_i32, %c0_i32_0 : i32, i32
  }
  func.func @transform_5(%arg0: i32) -> (i32, i32) {
    %c0_i32 = arith.constant 0 : i32
    %c0_i32_0 = arith.constant 0 : i32
    return %arg0, %c0_i32 : i32, i32
  }
}

</mosaic_0001>

<llo_original>
// kernel: tpu_custom_call.1
$region0: #{tpu_custom_call.1}
  #allocation0 [shape = 'u32[]', space=smem, size = 0x4, offset = 0x4, fixed_abs, tag = 'smem constant byte address 0x4 - core index']
  #allocation1 [shape = 'u32[144,128]{1,0:T(1,128)}', space=vmem, size = 0x12000, scoped, tag = 'internal scratch']
  %s0 = inlined_call_operand.hbm [shape: f32[64,256], index: 0, kind: input, shape index: {}]
  %s1 = inlined_call_operand.hbm [shape: bf16[256,128], index: 1, kind: input, shape index: {}]
  %s2 = inlined_call_operand.vmem [shape: f32[1,128], index: 2, kind: input, shape index: {}]
  %s3 = inlined_call_operand.hbm [shape: bf16[128,128], index: 3, kind: input, shape index: {}]
  %s4 = inlined_call_operand.vmem [shape: f32[1,128], index: 4, kind: input, shape index: {}]
  %s5 = inlined_call_operand.hbm [shape: bf16[64,128], index: 5, kind: output, shape index: {}]
  %s6 = sld [smem:[#allocation0]]
  $region42: #{tpu_custom_call.1} parent=0
    _
  %s8 = ssub.s32 1, %s6
  %s9 = scalar_select 0, %s8, %s6
  $region1: #{tpu_custom_call.1} parent=0
    #allocation2 [shape = 'u8[65536]{0}', space=vmem, size = 0x10000, scoped, tag = 'input window, operand 0, single buffered']
    #allocation3 [shape = 's32[1]{0}', space=sflag, size = 0x4, scoped, tag = 'scoped memory for tpu_custom_call.1']
    #allocation4 [shape = 's32[1]{0}', space=sflag, size = 0x4, scoped, tag = 'scoped memory for tpu_custom_call.1']
    #allocation5 [shape = 'u8[65536]{0}', space=vmem, size = 0x10000, scoped, tag = 'input window, operand 1, single buffered']
    #allocation6 [shape = 's32[1]{0}', space=sflag, size = 0x4, scoped, tag = 'scoped memory for tpu_custom_call.1']
    #allocation7 [shape = 'u8[32768]{0}', space=vmem, size = 0x8000, scoped, tag = 'input window, operand 3, single buffered']
    #allocation8 [shape = 'u8[16384]{0}', space=vmem, size = 0x4000, scoped, tag = 'output window, operand 0, single buffered']
    %10 = vsyncpa [#allocation3], 0
    %11 = vsyncpa [#allocation6], 0
    %12 = vsyncpa [#allocation4], 0
    // Predicated region
    $region2: #{tpu_custom_call.1} parent=1 // pred_check
      _
    $region3: #{tpu_custom_call.1} parent=1 // pred_check_branch
      %14 = sbr.rel (0) target = $region5
    $region4: #{tpu_custom_call.1} parent=1 // pred_region
      %s16 = ssub.s32 2048, 2048
      %17 = vsyncadd [#allocation3], %s16
      %s18 = sshll.u32 [#allocation2], 4
      %s19 = int_to_ptr.vmem [resolvable:$true] %s18
      %24 = dma.hbm_to_vmem [thread:$0]  %s0, 2048, %s19, [#allocation3], 256, 256, 16
    $region5: #{tpu_custom_call.1} parent=1 // pred_fallthru
      _
    // Predicated region
    $region6: #{tpu_custom_call.1} parent=1 // pred_check
      _
    $region7: #{tpu_custom_call.1} parent=1 // pred_check_branch
      %26 = sbr.rel (0) target = $region9
    $region8: #{tpu_custom_call.1} parent=1 // pred_region
      %s28 = ssub.s32 2048, 2048
      %29 = vsyncadd [#allocation6], %s28
      %s30 = sshll.u32 [#allocation5], 4
      %s31 = int_to_ptr.vmem [resolvable:$true] %s30
      %36 = dma.hbm_to_vmem [thread:$0]  %s1, 2048, %s31, [#allocation6], 64, 64, 4
    $region9: #{tpu_custom_call.1} parent=1 // pred_fallthru
      _
    // Predicated region
    $region10: #{tpu_custom_call.1} parent=1 // pred_check
      _
    $region11: #{tpu_custom_call.1} parent=1 // pred_check_branch
      %38 = sbr.rel (0) target = $region13
    $region12: #{tpu_custom_call.1} parent=1 // pred_region
      _
    $region13: #{tpu_custom_call.1} parent=1 // pred_fallthru
      _
    // Predicated region
    $region14: #{tpu_custom_call.1} parent=1 // pred_check
      _
    $region15: #{tpu_custom_call.1} parent=1 // pred_check_branch
      %40 = sbr.rel (0) target = $region17
    $region16: #{tpu_custom_call.1} parent=1 // pred_region
      %s42 = ssub.s32 1024, 1024
      %43 = vsyncadd [#allocation6], %s42
      %s44 = sshll.u32 [#allocation7], 4
      %s45 = int_to_ptr.vmem [resolvable:$true] %s44
      %50 = dma.hbm_to_vmem [thread:$0]  %s3, 1024, %s45, [#allocation6], 64, 64, 4
    $region17: #{tpu_custom_call.1} parent=1 // pred_fallthru
      _
    // Predicated region
    $region18: #{tpu_custom_call.1} parent=1 // pred_check
      _
    $region19: #{tpu_custom_call.1} parent=1 // pred_check_branch
      %52 = sbr.rel (0) target = $region21
    $region20: #{tpu_custom_call.1} parent=1 // pred_region
      _
    $region21: #{tpu_custom_call.1} parent=1 // pred_fallthru
      _
    // Predicated region
    $region22: #{tpu_custom_call.1} parent=1 // pred_check
      _
    $region23: #{tpu_custom_call.1} parent=1 // pred_check_branch
      %54 = sbr.rel (0) target = $region25
    $region24: #{tpu_custom_call.1} parent=1 // pred_region
      %55 = dma.done [#allocation3], 2048
    $region25: #{tpu_custom_call.1} parent=1 // pred_fallthru
      _
    // Predicated region
    $region26: #{tpu_custom_call.1} parent=1 // pred_check
      _
    $region27: #{tpu_custom_call.1} parent=1 // pred_check_branch
      %57 = sbr.rel (0) target = $region29
    $region28: #{tpu_custom_call.1} parent=1 // pred_region
      %58 = dma.done [#allocation6], 2048
    $region29: #{tpu_custom_call.1} parent=1 // pred_fallthru
      _
    // Predicated region
    $region30: #{tpu_custom_call.1} parent=1 // pred_check
      _
    $region31: #{tpu_custom_call.1} parent=1 // pred_check_branch
      %60 = sbr.rel (0) target = $region33
    $region32: #{tpu_custom_call.1} parent=1 // pred_region
      %61 = dma.done [#allocation6], 1024
    $region33: #{tpu_custom_call.1} parent=1 // pred_fallthru
      _
    %v63 = vld [vmem:[#allocation2] sm:$0xff]
    %v64 = vld [vmem:[#allocation2 + $0x8] sm:$0xff]
    %v65 = vld [vmem:[#allocation2 + $0x10] sm:$0xff]
    %v66 = vld [vmem:[#allocation2 + $0x18] sm:$0xff]
    %v67 = vld [vmem:[#allocation2 + $0x20] sm:$0xff]
    %v68 = vld [vmem:[#allocation2 + $0x28] sm:$0xff]
    %v69 = vld [vmem:[#allocation2 + $0x30] sm:$0xff]
    %v70 = vld [vmem:[#allocation2 + $0x38] sm:$0xff]
    %v71 = vld [vmem:[#allocation2 + $0x40] sm:$0xff]
    %v72 = vld [vmem:[#allocation2 + $0x48] sm:$0xff]
    %v73 = vld [vmem:[#allocation2 + $0x50] sm:$0xff]
    %v74 = vld [vmem:[#allocation2 + $0x58] sm:$0xff]
    %v75 = vld [vmem:[#allocation2 + $0x60] sm:$0xff]
    %v76 = vld [vmem:[#allocation2 + $0x68] sm:$0xff]
    %v77 = vld [vmem:[#allocation2 + $0x70] sm:$0xff]
    %v78 = vld [vmem:[#allocation2 + $0x78] sm:$0xff]
    %v79 = vpack.c.bf16 %v65, %v63
    %v80 = vpack.c.bf16 %v66, %v64
    %v81 = vpack.c.bf16 %v69, %v67
    %v82 = vpack.c.bf16 %v70, %v68
    %v83 = vpack.c.bf16 %v73, %v71
    %v84 = vpack.c.bf16 %v74, %v72
    %v85 = vpack.c.bf16 %v77, %v75
    %v86 = vpack.c.bf16 %v78, %v76
    %v87 = vld [vmem:[#allocation5] sm:$0xf]
    %v88 = vld [vmem:[#allocation5 + $0x4] sm:$0xf]
    %v89 = vld [vmem:[#allocation5 + $0x8] sm:$0xf]
    %v90 = vld [vmem:[#allocation5 + $0xc] sm:$0xf]
    %v91 = vld [vmem:[#allocation5 + $0x10] sm:$0xf]
    %v92 = vld [vmem:[#allocation5 + $0x14] sm:$0xf]
    %v93 = vld [vmem:[#allocation5 + $0x18] sm:$0xf]
    %v94 = vld [vmem:[#allocation5 + $0x1c] sm:$0xf]
    %v95 = vld [vmem:[#allocation5 + $0x20] sm:$0xf]
    %v96 = vld [vmem:[#allocation5 + $0x24] sm:$0xf]
    %v97 = vld [vmem:[#allocation5 + $0x28] sm:$0xf]
    %v98 = vld [vmem:[#allocation5 + $0x2c] sm:$0xf]
    %v99 = vld [vmem:[#allocation5 + $0x30] sm:$0xf]
    %v100 = vld [vmem:[#allocation5 + $0x34] sm:$0xf]
    %v101 = vld [vmem:[#allocation5 + $0x38] sm:$0xf]
    %v102 = vld [vmem:[#allocation5 + $0x3c] sm:$0xf]
    %v103 = vld [vmem:[#allocation5 + $0x40] sm:$0xf]
    %v104 = vld [vmem:[#allocation5 + $0x44] sm:$0xf]
    %v105 = vld [vmem:[#allocation5 + $0x48] sm:$0xf]
    %v106 = vld [vmem:[#allocation5 + $0x4c] sm:$0xf]
    %v107 = vld [vmem:[#allocation5 + $0x50] sm:$0xf]
    %v108 = vld [vmem:[#allocation5 + $0x54] sm:$0xf]
    %v109 = vld [vmem:[#allocation5 + $0x58] sm:$0xf]
    %v110 = vld [vmem:[#allocation5 + $0x5c] sm:$0xf]
    %v111 = vld [vmem:[#allocation5 + $0x60] sm:$0xf]
    %v112 = vld [vmem:[#allocation5 + $0x64] sm:$0xf]
    %v113 = vld [vmem:[#allocation5 + $0x68] sm:$0xf]
    %v114 = vld [vmem:[#allocation5 + $0x6c] sm:$0xf]
    %v115 = vld [vmem:[#allocation5 + $0x70] sm:$0xf]
    %v116 = vld [vmem:[#allocation5 + $0x74] sm:$0xf]
    %v117 = vld [vmem:[#allocation5 + $0x78] sm:$0xf]
    %v118 = vld [vmem:[#allocation5 + $0x7c] sm:$0xf]
    %v119 = vld [vmem:[%s2] sm:$0x1]
    %v121 = vlaneseq
    %v122 = vshrl.u32 %v121, 7
    %v123 = vsub.s32 0, %v122
    %v124 = vrot.slane %v119, %v123
    %v158 = vunpack.c.l.b16 %v87
    %v159 = vunpack.c.l.b16 %v88
    %v160 = vunpack.c.l.b16 %v89
    %v161 = vunpack.c.l.b16 %v90
    %v162 = vunpack.c.l.b16 %v91
    %v163 = vunpack.c.l.b16 %v92
    %v164 = vunpack.c.l.b16 %v93
    %v165 = vunpack.c.l.b16 %v94
    %v166 = vunpack.c.l.b16 %v95
    %v167 = vunpack.c.l.b16 %v96
    %v168 = vunpack.c.l.b16 %v97
    %v169 = vunpack.c.l.b16 %v98
    %v170 = vunpack.c.l.b16 %v99
    %v171 = vunpack.c.l.b16 %v100
    %v172 = vunpack.c.l.b16 %v101
    %v173 = vunpack.c.l.b16 %v102
    %v174 = vunpack.c.l.b16 %v103
    %v175 = vunpack.c.l.b16 %v104
    %v176 = vunpack.c.l.b16 %v105
    %v177 = vunpack.c.l.b16 %v106
    %v178 = vunpack.c.l.b16 %v107
    %v179 = vunpack.c.l.b16 %v108
    %v180 = vunpack.c.l.b16 %v109
    %v181 = vunpack.c.l.b16 %v110
    %v182 = vunpack.c.l.b16 %v111
    %v183 = vunpack.c.l.b16 %v112
    %v184 = vunpack.c.l.b16 %v113
    %v185 = vunpack.c.l.b16 %v114
    %v186 = vunpack.c.l.b16 %v115
    %v187 = vunpack.c.l.b16 %v116
    %v188 = vunpack.c.l.b16 %v117
    %v189 = vunpack.c.l.b16 %v118
    %v190 = vpack.c.b16 %v159, %v158
    %v191 = vpack.c.b16 %v161, %v160
    %v192 = vpack.c.b16 %v163, %v162
    %v193 = vpack.c.b16 %v165, %v164
    %v194 = vpack.c.b16 %v167, %v166
    %v195 = vpack.c.b16 %v169, %v168
    %v196 = vpack.c.b16 %v171, %v170
    %v197 = vpack.c.b16 %v173, %v172
    %v198 = vpack.c.b16 %v175, %v174
    %v199 = vpack.c.b16 %v177, %v176
    %v200 = vpack.c.b16 %v179, %v178
    %v201 = vpack.c.b16 %v181, %v180
    %v202 = vpack.c.b16 %v183, %v182
    %v203 = vpack.c.b16 %v185, %v184
    %v204 = vpack.c.b16 %v187, %v186
    %v205 = vpack.c.b16 %v189, %v188
    %222 = vmatprep.subr.bf16.mxu0 0
    %223 = vmatpush1.bf16.msra.mxu0 %v190
    %224 = vmatprep.subr.bf16.mxu0 0
    %225 = vmatpush1.bf16.msra.mxu0 %v191
    %226 = vmatprep.subr.bf16.mxu0 0
    %227 = vmatpush1.bf16.msra.mxu0 %v192
    %228 = vmatprep.subr.bf16.mxu0 0
    %229 = vmatpush1.bf16.msra.mxu0 %v193
    %230 = vmatprep.subr.bf16.mxu0 0
    %231 = vmatpush1.bf16.msra.mxu0 %v194
    %232 = vmatprep.subr.bf16.mxu0 0
    %233 = vmatpush1.bf16.msra.mxu0 %v195
    %234 = vmatprep.subr.bf16.mxu0 0
    %235 = vmatpush1.bf16.msra.mxu0 %v196
    %236 = vmatprep.subr.bf16.mxu0 0
    %237 = vmatpush1.bf16.msra.mxu0 %v197
    %238 = vmatprep.subr.bf16.mxu0 0
    %239 = vmatpush1.bf16.msra.mxu0 %v198
    %240 = vmatprep.subr.bf16.mxu0 0
    %241 = vmatpush1.bf16.msra.mxu0 %v199
    %242 = vmatprep.subr.bf16.mxu0 0
    %243 = vmatpush1.bf16.msra.mxu0 %v200
    %244 = vmatprep.subr.bf16.mxu0 0
    %245 = vmatpush1.bf16.msra.mxu0 %v201
    %246 = vmatprep.subr.bf16.mxu0 0
    %247 = vmatpush1.bf16.msra.mxu0 %v202
    %248 = vmatprep.subr.bf16.mxu0 0
    %249 = vmatpush1.bf16.msra.mxu0 %v203
    %250 = vmatprep.subr.bf16.mxu0 0
    %251 = vmatpush1.bf16.msra.mxu0 %v204
    %252 = vmatprep.subr.bf16.mxu0 0
    %253 = vmatpush1.bf16.msra.mxu0 %v205
    %254 = vmatprep.mubr.bf16.mxu0 %v80
    %255 = vmatmul.mubr.bf16.gmra.mrb[0].mxu0 %v79
    %v256 = vpop.f32.mrb[0].mxu0
    %v257 = vadd.f32 %v124, %v256
    %v258 = vpop.f32.mrb[0].mxu0
    %v259 = vpop.f32.mrb[0].mxu0
    %v260 = vadd.f32 %v124, %v259
    %v261 = vpop.f32.mrb[0].mxu0
    %262 = vmatprep.mubr.bf16.mxu0 %v82
    %263 = vmatmul.mubr.bf16.gmra.mrb[0].mxu0 %v81
    %v264 = vpop.f32.mrb[0].mxu0
    %v265 = vadd.f32 %v124, %v264
    %v266 = vpop.f32.mrb[0].mxu0
    %v267 = vpop.f32.mrb[0].mxu0
    %v268 = vadd.f32 %v124, %v267
    %v269 = vpop.f32.mrb[0].mxu0
    %270 = vmatprep.mubr.bf16.mxu0 %v84
    %271 = vmatmul.mubr.bf16.gmra.mrb[0].mxu0 %v83
    %v272 = vpop.f32.mrb[0].mxu0
    %v273 = vadd.f32 %v124, %v272
    %v274 = vpop.f32.mrb[0].mxu0
    %v275 = vpop.f32.mrb[0].mxu0
    %v276 = vadd.f32 %v124, %v275
    %v277 = vpop.f32.mrb[0].mxu0
    %278 = vmatprep.mubr.bf16.mxu0 %v86
    %279 = vmatmul.mubr.bf16.gmra.mrb[0].mxu0 %v85
    %v280 = vpop.f32.mrb[0].mxu0
    %v281 = vadd.f32 %v124, %v280
    %v282 = vpop.f32.mrb[0].mxu0
    %v283 = vpop.f32.mrb[0].mxu0
    %v284 = vadd.f32 %v124, %v283
    %v285 = vpop.f32.mrb[0].mxu0
    %286 = vdwg.mxu0
    %v287 = vmax.f32 %v257, 0.0
    %v288 = vmax.f32 %v260, 0.0
    %v289 = vmax.f32 %v265, 0.0
    %v290 = vmax.f32 %v268, 0.0
    %v291 = vmax.f32 %v273, 0.0
    %v292 = vmax.f32 %v276, 0.0
    %v293 = vmax.f32 %v281, 0.0
    %v294 = vmax.f32 %v284, 0.0
    %v295 = vpack.c.bf16 %v288, %v287
    %v296 = vpack.c.bf16 %v290, %v289
    %v297 = vpack.c.bf16 %v292, %v291
    %v298 = vpack.c.bf16 %v294, %v293
    %v299 = vld [vmem:[#allocation7] sm:$0xf]
    %v300 = vld [vmem:[#allocation7 + $0x4] sm:$0xf]
    %v301 = vld [vmem:[#allocation7 + $0x8] sm:$0xf]
    %v302 = vld [vmem:[#allocation7 + $0xc] sm:$0xf]
    %v303 = vld [vmem:[#allocation7 + $0x10] sm:$0xf]
    %v304 = vld [vmem:[#allocation7 + $0x14] sm:$0xf]
    %v305 = vld [vmem:[#allocation7 + $0x18] sm:$0xf]
    %v306 = vld [vmem:[#allocation7 + $0x1c] sm:$0xf]
    %v307 = vld [vmem:[#allocation7 + $0x20] sm:$0xf]
    %v308 = vld [vmem:[#allocation7 + $0x24] sm:$0xf]
    %v309 = vld [vmem:[#allocation7 + $0x28] sm:$0xf]
    %v310 = vld [vmem:[#allocation7 + $0x2c] sm:$0xf]
    %v311 = vld [vmem:[#allocation7 + $0x30] sm:$0xf]
    %v312 = vld [vmem:[#allocation7 + $0x34] sm:$0xf]
    %v313 = vld [vmem:[#allocation7 + $0x38] sm:$0xf]
    %v314 = vld [vmem:[#allocation7 + $0x3c] sm:$0xf]
    %v315 = vld [vmem:[%s4] sm:$0x1]
    %v317 = vlaneseq
    %v318 = vshrl.u32 %v317, 7
    %v319 = vsub.s32 0, %v318
    %v320 = vrot.slane %v315, %v319
    %v338 = vunpack.c.l.b16 %v299
    %v339 = vunpack.c.l.b16 %v300
    %v340 = vunpack.c.l.b16 %v301
    %v341 = vunpack.c.l.b16 %v302
    %v342 = vunpack.c.l.b16 %v303
    %v343 = vunpack.c.l.b16 %v304
    %v344 = vunpack.c.l.b16 %v305
    %v345 = vunpack.c.l.b16 %v306
    %v346 = vunpack.c.l.b16 %v307
    %v347 = vunpack.c.l.b16 %v308
    %v348 = vunpack.c.l.b16 %v309
    %v349 = vunpack.c.l.b16 %v310
    %v350 = vunpack.c.l.b16 %v311
    %v351 = vunpack.c.l.b16 %v312
    %v352 = vunpack.c.l.b16 %v313
    %v353 = vunpack.c.l.b16 %v314
    %v354 = vpack.c.b16 %v339, %v338
    %v355 = vpack.c.b16 %v341, %v340
    %v356 = vpack.c.b16 %v343, %v342
    %v357 = vpack.c.b16 %v345, %v344
    %v358 = vpack.c.b16 %v347, %v346
    %v359 = vpack.c.b16 %v349, %v348
    %v360 = vpack.c.b16 %v351, %v350
    %v361 = vpack.c.b16 %v353, %v352
    %370 = vmatprep.subr.bf16.mxu0 0
    %371 = vmatpush1.bf16.msra.mxu0 %v354
    %372 = vmatprep.subr.bf16.mxu0 0
    %373 = vmatpush1.bf16.msra.mxu0 %v355
    %374 = vmatprep.subr.bf16.mxu0 0
    %375 = vmatpush1.bf16.msra.mxu0 %v356
    %376 = vmatprep.subr.bf16.mxu0 0
    %377 = vmatpush1.bf16.msra.mxu0 %v357
    %378 = vmatprep.subr.bf16.mxu0 0
    %379 = vmatpush1.bf16.msra.mxu0 %v358
    %380 = vmatprep.subr.bf16.mxu0 0
    %381 = vmatpush1.bf16.msra.mxu0 %v359
    %382 = vmatprep.subr.bf16.mxu0 0
    %383 = vmatpush1.bf16.msra.mxu0 %v360
    %384 = vmatprep.subr.bf16.mxu0 0
    %385 = vmatpush1.bf16.msra.mxu0 %v361
    %386 = vmatprep.subr.bf16.mxu0 0
    %387 = vmatpush1.bf16.msra.mxu0 0
    %388 = vmatprep.subr.bf16.mxu0 0
    %389 = vmatpush1.bf16.msra.mxu0 0
    %390 = vmatprep.subr.bf16.mxu0 0
    %391 = vmatpush1.bf16.msra.mxu0 0
    %392 = vmatprep.subr.bf16.mxu0 0
    %393 = vmatpush1.bf16.msra.mxu0 0
    %394 = vmatprep.subr.bf16.mxu0 0
    %395 = vmatpush1.bf16.msra.mxu0 0
    %396 = vmatprep.subr.bf16.mxu0 0
    %397 = vmatpush1.bf16.msra.mxu0 0
    %398 = vmatprep.subr.bf16.mxu0 0
    %399 = vmatpush1.bf16.msra.mxu0 0
    %400 = vmatprep.subr.bf16.mxu0 0
    %401 = vmatpush1.bf16.msra.mxu0 0
    %402 = vmatprep.mubr.bf16.mxu0 0
    %403 = vmatmul.mubr.bf16.gmra.mrb[0].mxu0 %v295
    %v404 = vpop.f32.mrb[0].mxu0
    %v405 = vadd.f32 %v320, %v404
    %v406 = vpop.f32.mrb[0].mxu0
    %v407 = vpop.f32.mrb[0].mxu0
    %v408 = vadd.f32 %v320, %v407
    %v409 = vpop.f32.mrb[0].mxu0
    %410 = vmatprep.mubr.bf16.mxu0 0
    %411 = vmatmul.mubr.bf16.gmra.mrb[0].mxu0 %v296
    %v412 = vpop.f32.mrb[0].mxu0
    %v413 = vadd.f32 %v320, %v412
    %v414 = vpop.f32.mrb[0].mxu0
    %v415 = vpop.f32.mrb[0].mxu0
    %v416 = vadd.f32 %v320, %v415
    %v417 = vpop.f32.mrb[0].mxu0
    %418 = vmatprep.mubr.bf16.mxu0 0
    %419 = vmatmul.mubr.bf16.gmra.mrb[0].mxu0 %v297
    %v420 = vpop.f32.mrb[0].mxu0
    %v421 = vadd.f32 %v320, %v420
    %v422 = vpop.f32.mrb[0].mxu0
    %v423 = vpop.f32.mrb[0].mxu0
    %v424 = vadd.f32 %v320, %v423
    %v425 = vpop.f32.mrb[0].mxu0
    %426 = vmatprep.mubr.bf16.mxu0 0
    %427 = vmatmul.mubr.bf16.gmra.mrb[0].mxu0 %v298
    %v428 = vpop.f32.mrb[0].mxu0
    %v429 = vadd.f32 %v320, %v428
    %v430 = vpop.f32.mrb[0].mxu0
    %v431 = vpop.f32.mrb[0].mxu0
    %v432 = vadd.f32 %v320, %v431
    %v433 = vpop.f32.mrb[0].mxu0
    %434 = vdwg.mxu0
    %v435 = vpack.c.bf16 %v408, %v405
    %v436 = vpack.c.bf16 %v416, %v413
    %v437 = vpack.c.bf16 %v424, %v421
    %v438 = vpack.c.bf16 %v432, %v429
    %v443 = vunpack.c.l.b16 %v435
    %v444 = vunpack.c.h.b16 %v435
    %v445 = vunpack.c.l.b16 %v436
    %v446 = vunpack.c.h.b16 %v436
    %v447 = vunpack.c.l.b16 %v437
    %v448 = vunpack.c.h.b16 %v437
    %v449 = vunpack.c.l.b16 %v438
    %v450 = vunpack.c.h.b16 %v438
    %v451 = vpack.c.b16 %v443, %v443
    %v452 = vpack.c.b16 %v444, %v444
    %v453 = vpack.c.b16 %v445, %v445
    %v454 = vpack.c.b16 %v446, %v446
    %v455 = vpack.c.b16 %v447, %v447
    %v456 = vpack.c.b16 %v448, %v448
    %v457 = vpack.c.b16 %v449, %v449
    %v458 = vpack.c.b16 %v450, %v450
    %467 = vst [vmem:[#allocation8] sm:$0xf] %v451
    %468 = vst [vmem:[#allocation8 + $0x4] sm:$0xf] %v452
    %469 = vst [vmem:[#allocation8 + $0x8] sm:$0xf] %v453
    %470 = vst [vmem:[#allocation8 + $0xc] sm:$0xf] %v454
    %471 = vst [vmem:[#allocation8 + $0x10] sm:$0xf] %v455
    %472 = vst [vmem:[#allocation8 + $0x14] sm:$0xf] %v456
    %473 = vst [vmem:[#allocation8 + $0x18] sm:$0xf] %v457
    %474 = vst [vmem:[#allocation8 + $0x1c] sm:$0xf] %v458
    // Predicated region
    $region34: #{tpu_custom_call.1} parent=1 // pred_check
      _
    $region35: #{tpu_custom_call.1} parent=1 // pred_check_branch
      %476 = sbr.rel (0) target = $region37
    $region36: #{tpu_custom_call.1} parent=1 // pred_region
      %s478 = ssub.s32 512, 512
      %479 = vsyncadd [#allocation4], %s478
      %s480 = sshll.u32 [#allocation8], 4
      %s481 = int_to_ptr.vmem [resolvable:$true] %s480
      %486 = dma.vmem_to_hbm [thread:$0]  %s481, 512, %s5, [#allocation4], 64, 64, 4
    $region37: #{tpu_custom_call.1} parent=1 // pred_fallthru
      _
    // Predicated region
    $region38: #{tpu_custom_call.1} parent=1 // pred_check
      _
    $region39: #{tpu_custom_call.1} parent=1 // pred_check_branch
      %488 = sbr.rel (0) target = $region41
    $region40: #{tpu_custom_call.1} parent=1 // pred_region
      %489 = dma.done [#allocation4], 512
    $region41: #{tpu_custom_call.1} parent=1 // pred_fallthru
      _
    %490 = vsyncpa [#allocation3], 1
    %491 = vsyncpa [#allocation6], 1
    %492 = vsyncpa [#allocation4], 1

</llo_original>
